<compile_context>
chip_gen: v6e
topology: v6e:2x2x1
jax: 0.10.0
libtpu: 0.0.40
codegen_flags: <defaults>
</compile_context>

<pallas_src>
import jax
import jax.numpy as jnp
from jax.experimental import pallas as pl
from jax.experimental.pallas import tpu as pltpu


def _round_up(a, b):
    return (a + b - 1) // b * b


def _sublane(dtype):
    # Sublane packing multiple for the second-to-last block dim.
    return {4: 8, 2: 16, 1: 32}.get(jnp.dtype(dtype).itemsize, 8)


def _linear_relu_kernel(x_ref, w_ref, o_ref):
    # x_ref: (tm, c_in)   w_ref: (c_in, c_out_p)   o_ref: (tm, c_out_p)
    y = jnp.dot(x_ref[...], w_ref[...], preferred_element_type=jnp.float32)
    o_ref[...] = jnp.maximum(y, 0.0).astype(o_ref.dtype)


def _linear_relu_kernel_ksplit(x_ref, w_ref, o_ref, acc_ref):
    # x_ref: (tm, tk)   w_ref: (tk, c_out_p)   o_ref: (tm, c_out_p)   acc_ref: f32 scratch
    k = pl.program_id(1)

    @pl.when(k == 0)
    def _():
        acc_ref[...] = jnp.zeros_like(acc_ref)

    acc_ref[...] += jnp.dot(x_ref[...], w_ref[...], preferred_element_type=jnp.float32)

    @pl.when(k == pl.num_programs(1) - 1)
    def _():
        o_ref[...] = jnp.maximum(acc_ref[...], 0.0).astype(o_ref.dtype)


def downsampler_forward(x, weight, *, vmem_limit_bytes=48 * 1024 * 1024):
    """DownSampler forward: relu(x @ weight.T). weight is (c_out, c_in) like nn.Linear."""
    c_out, c_in = weight.shape
    lead_shape = x.shape[:-1]
    m = 1
    for d in lead_shape:
        m *= d
    x2d = x.reshape(m, c_in)

    x_bytes = jnp.dtype(x.dtype).itemsize
    w_bytes = jnp.dtype(weight.dtype).itemsize
    sub = _sublane(x.dtype)

    # Lane-dense output only when the padding overhead is small (<= 2x output bytes).
    # For tiny c_out a full-dim (masked-store) output is much cheaper than the extra
    # HBM writes + wrapper slice copy.
    c_out_128 = _round_up(c_out, 128)
    pad_out = (c_out % 128 != 0) and (c_out_128 <= 2 * c_out)
    c_out_p = c_out_128 if pad_out else c_out

    # One-time wrapper transpose to (c_in, c_out_p): canonical (M,K)@(K,N) for the MXU,
    # no per-iteration relayout of the resident RHS. Zero-column pad is inert under ReLU.
    w_t = weight.T
    if c_out_p != c_out:
        w_t = jnp.pad(w_t, ((0, 0), (0, c_out_p - c_out)))

    # ---- VMEM budgeting (applies to v5e/v6e/v7x; limit passed explicitly below) ----
    budget = int(0.8 * vmem_limit_bytes)          # headroom for compiler temporaries
    w_resident = c_in * c_out_p * w_bytes          # weight kept resident in VMEM

    # Decide whether the weight can stay resident (counted double-buffered so the
    # fallback spec below also fits) or must be streamed along a K grid axis.
    split_k = (2 * w_resident > budget // 2) and (c_in % 128 == 0)
    tk = c_in
    if split_k:
        tk = 128
        for cand in range(128, c_in, 128):
            if c_in % cand == 0 and 2 * cand * c_out_p * w_bytes <= budget // 2:
                tk = cand
    # TODO(synk): huge c_in that is not a multiple of 128 still keeps the weight resident
    # (may exceed the scoped limit); would need in-kernel K masking to split safely.

    if split_k:
        w_foot = 2 * tk * c_out_p * w_bytes        # streamed weight, double-buffered
        acc_per_row = c_out_p * 4                  # f32 accumulator scratch
    else:
        w_foot = 2 * w_resident                    # conservative: two weight buffers
        acc_per_row = 0
    row_bytes = 2 * (tk + c_out_p) * x_bytes + acc_per_row   # double-buffered in + out

    # Row tile sized in bytes so each step's DMA (multi-MiB) dwarfs the ~0.35us per-step
    # overhead; floored at 256 rows (no tm=8 cliff), 256-row granularity, dtype-aligned.
    tm = (budget - w_foot) // max(row_bytes, 1)
    tm = min(tm, 16384, _round_up(m, 256))
    tm = max(256, (tm // 256) * 256)
    tm = min(tm, _round_up(m, sub))                # never bigger than the aligned row count

    grid_m = pl.cdiv(m, tm)                        # ragged final block handled by pipeline

    cost = pl.CostEstimate(
        flops=2 * m * c_in * c_out_p,
        transcendentals=0,
        bytes_accessed=x_bytes * (m * c_in + m * c_out_p) + w_bytes * c_in * c_out_p,
    )
    cparams = pltpu.CompilerParams(
        dimension_semantics=("parallel",) if not split_k else ("parallel", "arbitrary"),
        vmem_limit_bytes=vmem_limit_bytes,
    )

    if not split_k:
        def call(w_spec):
            return pl.pallas_call(
                _linear_relu_kernel,
                out_shape=jax.ShapeDtypeStruct((m, c_out_p), x.dtype),
                grid_spec=pl.GridSpec(
                    grid=(grid_m,),
                    in_specs=[
                        pl.BlockSpec((tm, c_in), lambda i: (i, 0)),   # rows stream
                        w_spec,                                       # weight resident
                    ],
                    out_specs=pl.BlockSpec((tm, c_out_p), lambda i: (i, 0)),
                ),
                compiler_params=cparams,
                cost_estimate=cost,
            )(x2d, w_t)

        try:
            # Single-buffer the resident weight (constant index_map -> no re-DMA anyway),
            # halving its VMEM footprint.
            out2d = call(pl.BlockSpec((c_in, c_out_p), lambda i: (0, 0),
                                      pipeline_mode=pl.Buffered(1)))
        except Exception:
            # Older jax without single-buffering at the pallas_call level: default
            # double buffering (already accounted for in the budget above).
            out2d = call(pl.BlockSpec((c_in, c_out_p), lambda i: (0, 0)))
    else:
        out2d = pl.pallas_call(
            _linear_relu_kernel_ksplit,
            out_shape=jax.ShapeDtypeStruct((m, c_out_p), x.dtype),
            grid_spec=pltpu.PrefetchScalarGridSpec(
                num_scalar_prefetch=0,
                grid=(grid_m, c_in // tk),
                in_specs=[
                    pl.BlockSpec((tm, tk), lambda i, k: (i, k)),
                    pl.BlockSpec((tk, c_out_p), lambda i, k: (k, 0)),
                ],
                out_specs=pl.BlockSpec((tm, c_out_p), lambda i, k: (i, 0)),
                scratch_shapes=[pltpu.VMEM((tm, c_out_p), jnp.float32)],
            ),
            compiler_params=cparams,
            cost_estimate=cost,
        )(x2d, w_t)

    if c_out_p != c_out:
        out2d = out2d[:, :c_out]
    return out2d.reshape(*lead_shape, c_out)


if __name__ == "__main__":
    # Small shapes consistent with the module: x of shape (batch, seq, c_in).
    batch, seq, c_in, reduction = 2, 8, 32, 2
    c_out = c_in // reduction

    key = jax.random.PRNGKey(0)
    kx, kw = jax.random.split(key)
    x = jax.random.normal(kx, (batch, seq, c_in), dtype=jnp.float32)
    # Deterministic synthetic weight (shape matches nn.Linear(c_in, c_out).weight).
    weight = jax.random.normal(kw, (c_out, c_in), dtype=jnp.float32) * (1.0 / jnp.sqrt(c_in))

    out = downsampler_forward(x, weight)
    out = jax.block_until_ready(out)

    # Reference check in plain JAX (same semantics as F.linear + relu).
    ref = jnp.maximum(jnp.einsum("bsc,oc->bso", x, weight), 0.0)
    assert out.shape == (batch, seq, c_out), out.shape
    assert jnp.allclose(out, ref, atol=1e-4, rtol=1e-4), "mismatch vs reference"

    print("KERNEL_OK")
</pallas_src>

<mosaic_0001>
module attributes {stable_mosaic.version = 11 : i64} {
  func.func @_linear_relu_kernel(%arg0: i32, %arg1: memref<16x32xf32, #tpu.memory_space<vmem>>, %arg2: memref<32x16xf32, #tpu.memory_space<vmem>>, %arg3: memref<16x16xf32, #tpu.memory_space<vmem>>) attributes {dimension_semantics = [#tpu.dimension_semantics<parallel>], iteration_bounds = array<i64: 1>, scalar_prefetch = 0 : i64, scratch_operands = 0 : i64, tpu.core_type = #tpu.core_type<tc>, window_params = [{transform_indices = @transform_0, window_bounds = array<i64: 16, 32>}, {pipeline_mode = #tpu.pipeline_mode<synchronous>, transform_indices = @transform_1, window_bounds = array<i64: 32, 16>}, {transform_indices = @transform_2, window_bounds = array<i64: 16, 16>}]} {
    %c0 = arith.constant 0 : index
    %c0_0 = arith.constant 0 : index
    %0 = vector.load %arg1[%c0, %c0_0] : memref<16x32xf32, #tpu.memory_space<vmem>>, vector<16x32xf32>
    %c0_1 = arith.constant 0 : index
    %c0_2 = arith.constant 0 : index
    %1 = vector.load %arg2[%c0_1, %c0_2] : memref<32x16xf32, #tpu.memory_space<vmem>>, vector<32x16xf32>
    %cst = arith.constant dense<0.000000e+00> : vector<16x16xf32>
    %2 = tpu.matmul %0, %1, %cst {dimension_numbers = #tpu.dot_dimension_numbers<[1], [0], [0], [1], [0, 0, 1, 1], [], []>} : vector<16x32xf32>, vector<32x16xf32>, vector<16x16xf32> -> vector<16x16xf32>
    %cst_3 = arith.constant 0.000000e+00 : f32
    %3 = vector.broadcast %cst_3 : f32 to vector<16x16xf32>
    %4 = arith.maximumf %2, %3 : vector<16x16xf32>
    %c0_4 = arith.constant 0 : index
    %c0_5 = arith.constant 0 : index
    %5 = vector.load %arg3[%c0_4, %c0_5] : memref<16x16xf32, #tpu.memory_space<vmem>>, vector<16x16xf32>
    tpu.vector_store %arg3[%c0_4, %c0_5], %4 {strides = array<i32>} : memref<16x16xf32, #tpu.memory_space<vmem>>, vector<16x16xf32>,
    return
  }
  func.func @transform_0(%arg0: i32) -> (i32, i32) {
    %c0_i32 = arith.constant 0 : i32
    %c0_i32_0 = arith.constant 0 : i32
    return %arg0, %c0_i32 : i32, i32
  }
  func.func @transform_1(%arg0: i32) -> (i32, i32) {
    %c0_i32 = arith.constant 0 : i32
    %c0_i32_0 = arith.constant 0 : i32
    %c0_i32_1 = arith.constant 0 : i32
    return %c0_i32, %c0_i32_0 : i32, i32
  }
  func.func @transform_2(%arg0: i32) -> (i32, i32) {
    %c0_i32 = arith.constant 0 : i32
    %c0_i32_0 = arith.constant 0 : i32
    return %arg0, %c0_i32 : i32, i32
  }
}

module attributes {stable_mosaic.version = 11 : i64} {
  func.func @_linear_relu_kernel(%arg0: i32, %arg1: memref<16x32xf32, #tpu.memory_space<vmem>>, %arg2: memref<32x16xf32, #tpu.memory_space<vmem>>, %arg3: memref<16x16xf32, #tpu.memory_space<vmem>>) attributes {dimension_semantics = [#tpu.dimension_semantics<parallel>], iteration_bounds = array<i64: 1>, scalar_prefetch = 0 : i64, scratch_operands = 0 : i64, tpu.core_type = #tpu.core_type<tc>, window_params = [{transform_indices = @transform_0, window_bounds = array<i64: 16, 32>}, {pipeline_mode = #tpu.pipeline_mode<synchronous>, transform_indices = @transform_1, window_bounds = array<i64: 32, 16>}, {transform_indices = @transform_2, window_bounds = array<i64: 16, 16>}]} {
    %c0 = arith.constant 0 : index
    %c0_0 = arith.constant 0 : index
    %0 = vector.load %arg1[%c0, %c0_0] : memref<16x32xf32, #tpu.memory_space<vmem>>, vector<16x32xf32>
    %c0_1 = arith.constant 0 : index
    %c0_2 = arith.constant 0 : index
    %1 = vector.load %arg2[%c0_1, %c0_2] : memref<32x16xf32, #tpu.memory_space<vmem>>, vector<32x16xf32>
    %cst = arith.constant dense<0.000000e+00> : vector<16x16xf32>
    %2 = tpu.matmul %0, %1, %cst {dimension_numbers = #tpu.dot_dimension_numbers<[1], [0], [0], [1], [0, 0, 1, 1], [], []>} : vector<16x32xf32>, vector<32x16xf32>, vector<16x16xf32> -> vector<16x16xf32>
    %cst_3 = arith.constant 0.000000e+00 : f32
    %3 = vector.broadcast %cst_3 : f32 to vector<16x16xf32>
    %4 = arith.maximumf %2, %3 : vector<16x16xf32>
    %c0_4 = arith.constant 0 : index
    %c0_5 = arith.constant 0 : index
    %5 = vector.load %arg3[%c0_4, %c0_5] : memref<16x16xf32, #tpu.memory_space<vmem>>, vector<16x16xf32>
    tpu.vector_store %arg3[%c0_4, %c0_5], %4 {strides = array<i32>} : memref<16x16xf32, #tpu.memory_space<vmem>>, vector<16x16xf32>,
    return
  }
  func.func @transform_0(%arg0: i32) -> (i32, i32) {
    %c0_i32 = arith.constant 0 : i32
    %c0_i32_0 = arith.constant 0 : i32
    return %arg0, %c0_i32 : i32, i32
  }
  func.func @transform_1(%arg0: i32) -> (i32, i32) {
    %c0_i32 = arith.constant 0 : i32
    %c0_i32_0 = arith.constant 0 : i32
    %c0_i32_1 = arith.constant 0 : i32
    return %c0_i32, %c0_i32_0 : i32, i32
  }
  func.func @transform_2(%arg0: i32) -> (i32, i32) {
    %c0_i32 = arith.constant 0 : i32
    %c0_i32_0 = arith.constant 0 : i32
    return %arg0, %c0_i32 : i32, i32
  }
}

</mosaic_0001>

<llo_original>
// kernel: tpu_custom_call.1
$region0: #{tpu_custom_call.1}
  #allocation0 [shape = 'u32[]', space=smem, size = 0x4, offset = 0x4, fixed_abs, tag = 'smem constant byte address 0x4 - core index']
  #allocation1 [shape = 'u32[144,128]{1,0:T(1,128)}', space=vmem, size = 0x12000, scoped, tag = 'internal scratch']
  %s0 = inlined_call_operand.vmem [shape: f32[16,32], index: 0, kind: input, shape index: {}]
  %s1 = inlined_call_operand.vmem [shape: f32[32,16], index: 1, kind: input, shape index: {}]
  %s2 = inlined_call_operand.hbm [shape: f32[16,16], index: 2, kind: output, shape index: {}]
  %s3 = sld [smem:[#allocation0]]
  $region18: #{tpu_custom_call.1} parent=0
    _
  %s5 = ssub.s32 1, %s3
  %s6 = scalar_select 0, %s5, %s3
  $region1: #{tpu_custom_call.1} parent=0
    #allocation2 [shape = 'u8[8192]{0}', space=vmem, size = 0x2000, scoped, tag = 'output window, operand 0, single buffered']
    #allocation3 [shape = 's32[1]{0}', space=sflag, size = 0x4, scoped, tag = 'scoped memory for tpu_custom_call.1']
    %7 = vsyncpa [#allocation3], 0
    // Predicated region
    $region2: #{tpu_custom_call.1} parent=1 // pred_check
      _
    $region3: #{tpu_custom_call.1} parent=1 // pred_check_branch
      %9 = sbr.rel (0) target = $region5
    $region4: #{tpu_custom_call.1} parent=1 // pred_region
      _
    $region5: #{tpu_custom_call.1} parent=1 // pred_fallthru
      _
    // Predicated region
    $region6: #{tpu_custom_call.1} parent=1 // pred_check
      _
    $region7: #{tpu_custom_call.1} parent=1 // pred_check_branch
      %11 = sbr.rel (0) target = $region9
    $region8: #{tpu_custom_call.1} parent=1 // pred_region
      _
    $region9: #{tpu_custom_call.1} parent=1 // pred_fallthru
      _
    %v12 = vld [vmem:[%s0] sm:$0xff]
    %v13 = vld [vmem:[%s0 + $0x8] sm:$0xff]
    %v14 = vld [vmem:[%s1] sm:$0xff]
    %v15 = vld [vmem:[%s1 + $0x8] sm:$0xff]
    %v16 = vld [vmem:[%s1 + $0x10] sm:$0xff]
    %v17 = vld [vmem:[%s1 + $0x18] sm:$0xff]
    %vm18 = vcmask 261120
    %v20 = vsel %vm18, %v12, 0
    %v23 = vsel %vm18, %v13, 0
    %25 = vmatprep.subr.mxu0 0.0
    %26 = vmatpush1.msra.mxu0 0.0
    %27 = vmatprep.subr.mxu0 0.0
    %28 = vmatpush1.msra.mxu0 0.0
    %29 = vmatprep.subr.mxu0 0.0
    %30 = vmatpush1.msra.mxu0 0.0
    %31 = vmatprep.subr.mxu0 0.0
    %32 = vmatpush1.msra.mxu0 0.0
    %33 = vmatprep.subr.mxu0 0.0
    %34 = vmatpush1.msra.mxu0 0.0
    %35 = vmatprep.subr.mxu0 0.0
    %36 = vmatpush1.msra.mxu0 0.0
    %37 = vmatprep.subr.mxu0 0.0
    %38 = vmatpush1.msra.mxu0 0.0
    %39 = vmatprep.subr.mxu0 0.0
    %40 = vmatpush1.msra.mxu0 0.0
    %41 = vmatprep.subr.mxu0 0.0
    %42 = vmatpush1.msra.mxu0 0.0
    %43 = vmatprep.subr.mxu0 0.0
    %44 = vmatpush1.msra.mxu0 0.0
    %45 = vmatprep.subr.mxu0 0.0
    %46 = vmatpush1.msra.mxu0 0.0
    %47 = vmatprep.subr.mxu0 0.0
    %48 = vmatpush1.msra.mxu0 0.0
    %49 = vmatprep.subr.mxu0 0.0
    %50 = vmatpush1.msra.mxu0 %v17
    %51 = vmatprep.subr.mxu0 0.0
    %52 = vmatpush1.msra.mxu0 %v16
    %53 = vmatprep.subr.mxu0 0.0
    %54 = vmatpush1.msra.mxu0 %v15
    %55 = vmatprep.subr.mxu0 0.0
    %56 = vmatpush1.msra.mxu0 %v14
    %57 = vmatprep.subr.mxu0 0.0
    %58 = vmatpush2.msra.mxu0 0.0
    %59 = vmatprep.subr.mxu0 0.0
    %60 = vmatpush2.msra.mxu0 0.0
    %61 = vmatprep.subr.mxu0 0.0
    %62 = vmatpush2.msra.mxu0 0.0
    %63 = vmatprep.subr.mxu0 0.0
    %64 = vmatpush2.msra.mxu0 0.0
    %65 = vmatprep.subr.mxu0 0.0
    %66 = vmatpush2.msra.mxu0 0.0
    %67 = vmatprep.subr.mxu0 0.0
    %68 = vmatpush2.msra.mxu0 0.0
    %69 = vmatprep.subr.mxu0 0.0
    %70 = vmatpush2.msra.mxu0 0.0
    %71 = vmatprep.subr.mxu0 0.0
    %72 = vmatpush2.msra.mxu0 0.0
    %73 = vmatprep.subr.mxu0 0.0
    %74 = vmatpush2.msra.mxu0 0.0
    %75 = vmatprep.subr.mxu0 0.0
    %76 = vmatpush2.msra.mxu0 0.0
    %77 = vmatprep.subr.mxu0 0.0
    %78 = vmatpush2.msra.mxu0 0.0
    %79 = vmatprep.subr.mxu0 0.0
    %80 = vmatpush2.msra.mxu0 0.0
    %81 = vmatprep.subr.mxu0 0.0
    %82 = vmatpush2.msra.mxu0 0.0
    %83 = vmatprep.subr.mxu0 0.0
    %84 = vmatpush2.msra.mxu0 0.0
    %85 = vmatprep.subr.mxu0 0.0
    %86 = vmatpush2.msra.mxu0 0.0
    %87 = vmatprep.subr.mxu0 0.0
    %88 = vmatpush2.msra.mxu0 0.0
    %89 = vmatprep.mubr.f32.mxu0 0.0
    %90 = vmatmul.mubr.f32.gmra.mxu0 %v20
    %v91 = vpop.f32.mrf.mxu0
    %v92 = vadd.f32 0.0, %v91
    %v93 = vpop.f32.mrf.mxu0
    %94 = vmatprep.mubr.f32.mxu0 0.0
    %95 = vmatmul.mubr.f32.gmra.mxu0 %v23
    %v96 = vpop.f32.mrf.mxu0
    %v97 = vadd.f32 0.0, %v96
    %v98 = vpop.f32.mrf.mxu0
    %99 = vdwg.mxu0
    %v100 = vmax.f32 %v92, 0.0
    %v101 = vmax.f32 %v97, 0.0
    %vm102 = vcmask 130048
    %103 = vst.msk [vmem:[#allocation2] sm:$0xff] %vm102, %v100
    %104 = vst.msk [vmem:[#allocation2 + $0x8] sm:$0xff] %vm102, %v101
    // Predicated region
    $region10: #{tpu_custom_call.1} parent=1 // pred_check
      _
    $region11: #{tpu_custom_call.1} parent=1 // pred_check_branch
      %106 = sbr.rel (0) target = $region13
    $region12: #{tpu_custom_call.1} parent=1 // pred_region
      %s108 = ssub.s32 256, 256
      %109 = vsyncadd [#allocation3], %s108
      %s110 = sshll.u32 [#allocation2], 4
      %s111 = int_to_ptr.vmem [resolvable:$true] %s110
      %116 = dma.vmem_to_hbm [thread:$0]  %s111, 256, %s2, [#allocation3], 128, 128, 8
    $region13: #{tpu_custom_call.1} parent=1 // pred_fallthru
      _
    // Predicated region
    $region14: #{tpu_custom_call.1} parent=1 // pred_check
      _
    $region15: #{tpu_custom_call.1} parent=1 // pred_check_branch
      %118 = sbr.rel (0) target = $region17
    $region16: #{tpu_custom_call.1} parent=1 // pred_region
      %119 = dma.done [#allocation3], 256
    $region17: #{tpu_custom_call.1} parent=1 // pred_fallthru
      _
    %120 = vsyncpa [#allocation3], 1

// kernel: tpu_custom_call.1
$region0: #{tpu_custom_call.1}
  #allocation0 [shape = 'u32[]', space=smem, size = 0x4, offset = 0x4, fixed_abs, tag = 'smem constant byte address 0x4 - core index']
  #allocation1 [shape = 'u32[144,128]{1,0:T(1,128)}', space=vmem, size = 0x12000, scoped, tag = 'internal scratch']
  %s0 = inlined_call_operand.vmem [shape: f32[16,32], index: 0, kind: input, shape index: {}]
  %s1 = inlined_call_operand.vmem [shape: f32[32,16], index: 1, kind: input, shape index: {}]
  %s2 = inlined_call_operand.hbm [shape: f32[16,16], index: 2, kind: output, shape index: {}]
  %s3 = sld [smem:[#allocation0]]
  $region18: #{tpu_custom_call.1} parent=0
    _
  %s5 = ssub.s32 1, %s3
  %s6 = scalar_select 0, %s5, %s3
  $region1: #{tpu_custom_call.1} parent=0
    #allocation2 [shape = 'u8[8192]{0}', space=vmem, size = 0x2000, scoped, tag = 'output window, operand 0, single buffered']
    #allocation3 [shape = 's32[1]{0}', space=sflag, size = 0x4, scoped, tag = 'scoped memory for tpu_custom_call.1']
    %7 = vsyncpa [#allocation3], 0
    // Predicated region
    $region2: #{tpu_custom_call.1} parent=1 // pred_check
      _
    $region3: #{tpu_custom_call.1} parent=1 // pred_check_branch
      %9 = sbr.rel (0) target = $region5
    $region4: #{tpu_custom_call.1} parent=1 // pred_region
      _
    $region5: #{tpu_custom_call.1} parent=1 // pred_fallthru
      _
    // Predicated region
    $region6: #{tpu_custom_call.1} parent=1 // pred_check
      _
    $region7: #{tpu_custom_call.1} parent=1 // pred_check_branch
      %11 = sbr.rel (0) target = $region9
    $region8: #{tpu_custom_call.1} parent=1 // pred_region
      _
    $region9: #{tpu_custom_call.1} parent=1 // pred_fallthru
      _
    %v12 = vld [vmem:[%s0] sm:$0xff]
    %v13 = vld [vmem:[%s0 + $0x8] sm:$0xff]
    %v14 = vld [vmem:[%s1] sm:$0xff]
    %v15 = vld [vmem:[%s1 + $0x8] sm:$0xff]
    %v16 = vld [vmem:[%s1 + $0x10] sm:$0xff]
    %v17 = vld [vmem:[%s1 + $0x18] sm:$0xff]
    %vm18 = vcmask 261120
    %v20 = vsel %vm18, %v12, 0
    %v23 = vsel %vm18, %v13, 0
    %25 = vmatprep.subr.mxu0 0.0
    %26 = vmatpush1.msra.mxu0 0.0
    %27 = vmatprep.subr.mxu0 0.0
    %28 = vmatpush1.msra.mxu0 0.0
    %29 = vmatprep.subr.mxu0 0.0
    %30 = vmatpush1.msra.mxu0 0.0
    %31 = vmatprep.subr.mxu0 0.0
    %32 = vmatpush1.msra.mxu0 0.0
    %33 = vmatprep.subr.mxu0 0.0
    %34 = vmatpush1.msra.mxu0 0.0
    %35 = vmatprep.subr.mxu0 0.0
    %36 = vmatpush1.msra.mxu0 0.0
    %37 = vmatprep.subr.mxu0 0.0
    %38 = vmatpush1.msra.mxu0 0.0
    %39 = vmatprep.subr.mxu0 0.0
    %40 = vmatpush1.msra.mxu0 0.0
    %41 = vmatprep.subr.mxu0 0.0
    %42 = vmatpush1.msra.mxu0 0.0
    %43 = vmatprep.subr.mxu0 0.0
    %44 = vmatpush1.msra.mxu0 0.0
    %45 = vmatprep.subr.mxu0 0.0
    %46 = vmatpush1.msra.mxu0 0.0
    %47 = vmatprep.subr.mxu0 0.0
    %48 = vmatpush1.msra.mxu0 0.0
    %49 = vmatprep.subr.mxu0 0.0
    %50 = vmatpush1.msra.mxu0 %v17
    %51 = vmatprep.subr.mxu0 0.0
    %52 = vmatpush1.msra.mxu0 %v16
    %53 = vmatprep.subr.mxu0 0.0
    %54 = vmatpush1.msra.mxu0 %v15
    %55 = vmatprep.subr.mxu0 0.0
    %56 = vmatpush1.msra.mxu0 %v14
    %57 = vmatprep.subr.mxu0 0.0
    %58 = vmatpush2.msra.mxu0 0.0
    %59 = vmatprep.subr.mxu0 0.0
    %60 = vmatpush2.msra.mxu0 0.0
    %61 = vmatprep.subr.mxu0 0.0
    %62 = vmatpush2.msra.mxu0 0.0
    %63 = vmatprep.subr.mxu0 0.0
    %64 = vmatpush2.msra.mxu0 0.0
    %65 = vmatprep.subr.mxu0 0.0
    %66 = vmatpush2.msra.mxu0 0.0
    %67 = vmatprep.subr.mxu0 0.0
    %68 = vmatpush2.msra.mxu0 0.0
    %69 = vmatprep.subr.mxu0 0.0
    %70 = vmatpush2.msra.mxu0 0.0
    %71 = vmatprep.subr.mxu0 0.0
    %72 = vmatpush2.msra.mxu0 0.0
    %73 = vmatprep.subr.mxu0 0.0
    %74 = vmatpush2.msra.mxu0 0.0
    %75 = vmatprep.subr.mxu0 0.0
    %76 = vmatpush2.msra.mxu0 0.0
    %77 = vmatprep.subr.mxu0 0.0
    %78 = vmatpush2.msra.mxu0 0.0
    %79 = vmatprep.subr.mxu0 0.0
    %80 = vmatpush2.msra.mxu0 0.0
    %81 = vmatprep.subr.mxu0 0.0
    %82 = vmatpush2.msra.mxu0 0.0
    %83 = vmatprep.subr.mxu0 0.0
    %84 = vmatpush2.msra.mxu0 0.0
    %85 = vmatprep.subr.mxu0 0.0
    %86 = vmatpush2.msra.mxu0 0.0
    %87 = vmatprep.subr.mxu0 0.0
    %88 = vmatpush2.msra.mxu0 0.0
    %89 = vmatprep.mubr.f32.mxu0 0.0
    %90 = vmatmul.mubr.f32.gmra.mxu0 %v20
    %v91 = vpop.f32.mrf.mxu0
    %v92 = vadd.f32 0.0, %v91
    %v93 = vpop.f32.mrf.mxu0
    %94 = vmatprep.mubr.f32.mxu0 0.0
    %95 = vmatmul.mubr.f32.gmra.mxu0 %v23
    %v96 = vpop.f32.mrf.mxu0
    %v97 = vadd.f32 0.0, %v96
    %v98 = vpop.f32.mrf.mxu0
    %99 = vdwg.mxu0
    %v100 = vmax.f32 %v92, 0.0
    %v101 = vmax.f32 %v97, 0.0
    %vm102 = vcmask 130048
    %103 = vst.msk [vmem:[#allocation2] sm:$0xff] %vm102, %v100
    %104 = vst.msk [vmem:[#allocation2 + $0x8] sm:$0xff] %vm102, %v101
    // Predicated region
    $region10: #{tpu_custom_call.1} parent=1 // pred_check
      _
    $region11: #{tpu_custom_call.1} parent=1 // pred_check_branch
      %106 = sbr.rel (0) target = $region13
    $region12: #{tpu_custom_call.1} parent=1 // pred_region
      %s108 = ssub.s32 256, 256
      %109 = vsyncadd [#allocation3], %s108
      %s110 = sshll.u32 [#allocation2], 4
      %s111 = int_to_ptr.vmem [resolvable:$true] %s110
      %116 = dma.vmem_to_hbm [thread:$0]  %s111, 256, %s2, [#allocation3], 128, 128, 8
    $region13: #{tpu_custom_call.1} parent=1 // pred_fallthru
      _
    // Predicated region
    $region14: #{tpu_custom_call.1} parent=1 // pred_check
      _
    $region15: #{tpu_custom_call.1} parent=1 // pred_check_branch
      %118 = sbr.rel (0) target = $region17
    $region16: #{tpu_custom_call.1} parent=1 // pred_region
      %119 = dma.done [#allocation3], 256
    $region17: #{tpu_custom_call.1} parent=1 // pred_fallthru
      _
    %120 = vsyncpa [#allocation3], 1

</llo_original>
